<compile_context>
chip_gen: v6e
topology: v6e:2x2x1
jax: 0.10.0
libtpu: 0.0.40
codegen_flags: <defaults>
</compile_context>

<pallas_src>
import functools

import jax
import jax.numpy as jnp
from jax.experimental import pallas as pl
from jax.experimental.pallas import tpu as pltpu


def _pick_tile_t(T):
    """Largest lane-dense tile that divides T (fallback: the whole T)."""
    for cand in (1024, 512, 256, 128):
        if T % cand == 0:
            return cand
    return T


# ----------------------------------------------------------------------------
# Fused kernel: conv1d feature extractor -> [conv2d encoder + linear decoder]
# ----------------------------------------------------------------------------
def spec2dcnn_kernel(x_ref, w1_ref, b1_ref, m_ref, bd_ref, o_ref, *,
                     T, TILE_T, pw, apply_sigmoid):
    # x_ref:  (1, 1, Cin, TILE_T + 2*(p1+pw))  raw-input time window with halo
    # w1_ref: (K, Cout1, Cin)                  conv1d taps
    # b1_ref: (Cout1, 1)
    # m_ref:  (KW, C, Cout1)                   folded conv2d(F->1)+decoder weights
    # bd_ref: (C, 1)                           folded bias (bd + b2 * sum_h wd[h])
    # o_ref:  (1, C, TILE_T)                   lane-dense logits tile
    j = pl.program_id(1)
    K = w1_ref.shape[0]
    Cout1 = w1_ref.shape[1]
    KW = m_ref.shape[0]
    C = m_ref.shape[1]
    W2 = TILE_T + 2 * pw                       # conv1d output width (time halo for conv2d)

    x = x_ref[0, 0]                            # (Cin, TILE_T + 2*(p1+pw))

    # ---- Conv1d 'same' feature extractor: K taps as K small MXU contractions ----
    # feat[cout, s] = b1[cout] + sum_{k, cin} w1[k, cout, cin] * x[cin, s + k]
    feat = jnp.zeros((Cout1, W2), jnp.float32)
    for k in range(K):                         # K is small & static -> unrolled
        feat = feat + jnp.dot(w1_ref[k], x[:, k:k + W2],
                              preferred_element_type=jnp.float32)
    feat = feat + b1_ref[...]                  # (Cout1, 1) broadcast

    # Zero the halo columns whose global timestep lies outside [0, T): they are the
    # conv2d 'same'-padding columns in time and must be exactly zero.
    gt = j * TILE_T - pw + jax.lax.broadcasted_iota(jnp.int32, (Cout1, W2), 1)
    feat = jnp.where((gt >= 0) & (gt < T), feat, 0.0)

    # ---- Fused [Conv2d(F -> 1, 'same') encoder + Linear(H -> C) decoder] ----
    # logits[c, t] = bd'[c] + sum_kw  M[kw] @ feat[:, t + kw]
    # (the H-direction 'same' padding and the decoder contraction over H are folded
    #  into M[kw] in the wrapper; this is exact, weight-only algebra.)
    acc = jnp.zeros((C, TILE_T), jnp.float32)
    for kw in range(KW):
        acc = acc + jnp.dot(m_ref[kw], feat[:, kw:kw + TILE_T],
                            preferred_element_type=jnp.float32)
    logits = acc + bd_ref[...]                 # (C, 1) broadcast
    if apply_sigmoid:
        logits = jax.nn.sigmoid(logits)
    o_ref[0] = logits.astype(o_ref.dtype)


# ----------------------------------------------------------------------------
# Wrapper: weight folding + layout prep + pallas_call + loss (plain-JAX glue only)
# ----------------------------------------------------------------------------
def bce_with_logits_mean(logits, labels):
    # numerically-stable mean BCE-with-logits, matching nn.BCEWithLogitsLoss()
    z, y = logits, labels
    loss = jnp.maximum(z, 0.0) - z * y + jnp.log1p(jnp.exp(-jnp.abs(z)))
    return jnp.mean(loss)


def _fold_weights(w1, b1, w2, b2, wd, bd):
    """One-time (trace-time) weight-only folding. Exact algebra, no activations involved."""
    Cout1, Cin, K = w1.shape
    F, KH, KW = w2.shape
    H = Cout1 // F
    C = wd.shape[1]
    ph = (KH - 1) // 2

    w1_k = jnp.transpose(w1, (2, 0, 1))                         # (K, Cout1, Cin)
    b1_c = b1.reshape(Cout1, 1)

    # Fold conv2d(F->1, 'same' over H) + Linear(H->C) into KW matrices (C, F*H):
    #   M[kw][c, f*H + h'] = sum_kh 1[0 <= h'+ph-kh < H] * wd[h'+ph-kh, c] * w2[f, kh, kw]
    wd_pad = jnp.pad(wd, ((ph, ph), (0, 0)))                    # (H + 2*ph, C)
    m_list = []
    for kw in range(KW):
        m_kw = jnp.zeros((C, F * H), jnp.float32)
        for kh in range(KH):
            wsl = wd_pad[2 * ph - kh: 2 * ph - kh + H, :]       # (H, C)
            contrib = wsl.T[:, None, :] * w2[None, :, kh, kw, None]   # (C, F, H)
            m_kw = m_kw + contrib.reshape(C, F * H)
        m_list.append(m_kw)
    m = jnp.stack(m_list, axis=0)                               # (KW, C, F*H)
    bd_fold = (bd + b2[0] * jnp.sum(wd, axis=0)).reshape(C, 1)  # (C, 1)
    return w1_k, b1_c, m, bd_fold


def spec2dcnn_forward(x, params, labels=None, apply_sigmoid=False, tile_t=None):
    """x: (B, Cin, T); returns dict with 'logits' (B, T, n_classes) [+ 'loss']."""
    w1, b1, w2, b2, wd, bd = params
    B, Cin, T = x.shape
    Cout1, _, K = w1.shape
    F, KH, KW = w2.shape
    C = wd.shape[1]
    assert Cout1 % F == 0
    assert K % 2 == 1 and KH % 2 == 1 and KW % 2 == 1, "'same' padding assumes odd kernels"

    p1, pw = (K - 1) // 2, (KW - 1) // 2
    TILE_T = tile_t if tile_t is not None else _pick_tile_t(T)
    assert T % TILE_T == 0, "T must be divisible by the time tile"
    nT = T // TILE_T
    halo = p1 + pw
    W = TILE_T + 2 * halo                      # input window width (conv1d + conv2d halo)

    # Overlapping per-tile time windows of the (small) raw input; the big (F,H,T)
    # spectrogram of an unfused implementation never exists / never hits HBM.
    x_pad = jnp.pad(x, ((0, 0), (0, 0), (halo, halo)))
    x_win = jnp.stack(
        [x_pad[:, :, j * TILE_T: j * TILE_T + W] for j in range(nT)], axis=1
    )                                           # (B, nT, Cin, W)

    w1_k, b1_c, m, bd_fold = _fold_weights(w1, b1, w2, b2, wd, bd)

    flops = 2 * B * T * (Cout1 * K * Cin + KW * C * Cout1)
    transcendentals = B * T * C if apply_sigmoid else 0
    bytes_accessed = 4 * (x_win.size + w1_k.size + b1_c.size + m.size
                          + bd_fold.size + B * C * T)

    logits_ct = pl.pallas_call(
        functools.partial(spec2dcnn_kernel, T=T, TILE_T=TILE_T, pw=pw,
                          apply_sigmoid=apply_sigmoid),
        out_shape=jax.ShapeDtypeStruct((B, C, T), jnp.float32),
        grid=(B, nT),
        in_specs=[
            pl.BlockSpec((1, 1, Cin, W), lambda b, j: (b, j, 0, 0)),
            pl.BlockSpec((K, Cout1, Cin), lambda b, j: (0, 0, 0)),
            pl.BlockSpec((Cout1, 1), lambda b, j: (0, 0)),
            pl.BlockSpec((KW, C, Cout1), lambda b, j: (0, 0, 0)),
            pl.BlockSpec((C, 1), lambda b, j: (0, 0)),
        ],
        out_specs=pl.BlockSpec((1, C, TILE_T), lambda b, j: (b, 0, j)),
        compiler_params=pltpu.CompilerParams(
            dimension_semantics=("parallel", "parallel")),
        cost_estimate=pl.CostEstimate(flops=flops,
                                      transcendentals=transcendentals,
                                      bytes_accessed=bytes_accessed),
    )(x_win, w1_k, b1_c, m, bd_fold)

    logits = jnp.transpose(logits_ct, (0, 2, 1))            # (B, T, C)

    output = {"logits": logits}
    if labels is not None:
        # Mirrors the PyTorch module exactly: loss_fn is applied to `logits` as returned
        # (i.e. post-sigmoid when sigmod=True; raw logits in the default sigmod=False case).
        output["loss"] = bce_with_logits_mean(logits, labels)
    return output


# ----------------------------------------------------------------------------
# Plain-JAX reference (for correctness checking only; mirrors the staged module)
# ----------------------------------------------------------------------------
def spec2dcnn_reference(x, params, apply_sigmoid=False):
    w1, b1, w2, b2, wd, bd = params
    B = x.shape[0]
    Cout1 = w1.shape[0]
    F = w2.shape[0]
    H = Cout1 // F
    feat = jax.lax.conv_general_dilated(
        x, w1, window_strides=(1,), padding="SAME",
        dimension_numbers=("NCH", "OIH", "NCH")) + b1[None, :, None]
    spec = feat.reshape(B, F, H, -1)
    enc = jax.lax.conv_general_dilated(
        spec, w2[None], window_strides=(1, 1), padding="SAME",
        dimension_numbers=("NCHW", "OIHW", "NCHW"))[:, 0] + b2[0]
    logits = jnp.einsum("bht,hc->btc", enc, wd) + bd
    if apply_sigmoid:
        logits = jax.nn.sigmoid(logits)
    return logits


def init_params(key, Cin, F, H, K, KH, KW, n_classes):
    Cout1 = F * H
    k1, k2, k3, k4, k5, k6 = jax.random.split(key, 6)
    w1 = 0.1 * jax.random.normal(k1, (Cout1, Cin, K), jnp.float32)
    b1 = 0.1 * jax.random.normal(k2, (Cout1,), jnp.float32)
    w2 = 0.1 * jax.random.normal(k3, (F, KH, KW), jnp.float32)
    b2 = 0.1 * jax.random.normal(k4, (1,), jnp.float32)
    wd = 0.1 * jax.random.normal(k5, (H, n_classes), jnp.float32)
    bd = 0.1 * jax.random.normal(k6, (n_classes,), jnp.float32)
    return (w1, b1, w2, b2, wd, bd)


if __name__ == "__main__":
    # Small, deterministic example shapes (T chosen so the lane-dense 128-wide
    # time tiling and the halo / edge-masking paths are both exercised).
    B, Cin, T = 2, 4, 256       # (batch, n_channels, n_timesteps)
    F, H = 4, 16                # U-Net in_channels, spectrogram height
    K, KH, KW = 3, 3, 3         # conv kernel sizes
    n_classes = 3

    key = jax.random.PRNGKey(0)
    kx, kl, kp = jax.random.split(key, 3)
    x = jax.random.normal(kx, (B, Cin, T), jnp.float32)
    labels = (jax.random.uniform(kl, (B, T, n_classes)) > 0.5).astype(jnp.float32)
    params = init_params(kp, Cin, F, H, K, KH, KW, n_classes)

    fwd = jax.jit(spec2dcnn_forward, static_argnames=("apply_sigmoid", "tile_t"))
    out = fwd(x, params, labels, apply_sigmoid=False, tile_t=128)
    logits = jax.block_until_ready(out["logits"])
    loss = jax.block_until_ready(out["loss"])

    assert logits.shape == (B, T, n_classes)
    assert bool(jnp.all(jnp.isfinite(logits))) and bool(jnp.isfinite(loss))

    ref = spec2dcnn_reference(x, params, apply_sigmoid=False)
    max_err = float(jnp.max(jnp.abs(logits - ref)))
    assert max_err < 2e-2, f"max abs error vs reference: {max_err}"
    print("KERNEL_OK")
</pallas_src>

<mosaic_0001>
module attributes {stable_mosaic.version = 11 : i64} {
  func.func @spec2dcnn_kernel(%arg0: i32, %arg1: i32, %arg2: memref<1x1x4x132xf32, #tpu.memory_space<vmem>>, %arg3: memref<3x64x4xf32, #tpu.memory_space<vmem>>, %arg4: memref<64x1xf32, #tpu.memory_space<vmem>>, %arg5: memref<3x3x64xf32, #tpu.memory_space<vmem>>, %arg6: memref<3x1xf32, #tpu.memory_space<vmem>>, %arg7: memref<1x3x128xf32, #tpu.memory_space<vmem>>) attributes {dimension_semantics = [#tpu.dimension_semantics<parallel>, #tpu.dimension_semantics<parallel>], iteration_bounds = array<i64: 2, 2>, scalar_prefetch = 0 : i64, scratch_operands = 0 : i64, tpu.core_type = #tpu.core_type<tc>, window_params = [{transform_indices = @transform_0, window_bounds = array<i64: 1, 1, 4, 132>}, {pipeline_mode = #tpu.pipeline_mode<synchronous>, transform_indices = @transform_1, window_bounds = array<i64: 3, 64, 4>}, {pipeline_mode = #tpu.pipeline_mode<synchronous>, transform_indices = @transform_2, window_bounds = array<i64: 64, 1>}, {pipeline_mode = #tpu.pipeline_mode<synchronous>, transform_indices = @transform_3, window_bounds = array<i64: 3, 3, 64>}, {pipeline_mode = #tpu.pipeline_mode<synchronous>, transform_indices = @transform_4, window_bounds = array<i64: 3, 1>}, {transform_indices = @transform_5, window_bounds = array<i64: 1, 3, 128>}]} {
    %c0 = arith.constant 0 : index
    %c0_0 = arith.constant 0 : index
    %c0_1 = arith.constant 0 : index
    %c0_2 = arith.constant 0 : index
    %0 = vector.load %arg2[%c0, %c0_0, %c0_1, %c0_2] : memref<1x1x4x132xf32, #tpu.memory_space<vmem>>, vector<1x1x4x132xf32>
    %1 = vector.shape_cast %0 : vector<1x1x4x132xf32> to vector<4x132xf32>
    %cst = arith.constant 0.000000e+00 : f32
    %2 = vector.broadcast %cst : f32 to vector<64x130xf32>
    %c0_3 = arith.constant 0 : index
    %c0_4 = arith.constant 0 : index
    %c0_5 = arith.constant 0 : index
    %3 = vector.load %arg3[%c0_3, %c0_4, %c0_5] : memref<3x64x4xf32, #tpu.memory_space<vmem>>, vector<1x64x4xf32>
    %4 = vector.shape_cast %3 : vector<1x64x4xf32> to vector<64x4xf32>
    %5 = vector.extract_strided_slice %1 {offsets = [0, 0], sizes = [4, 130], strides = [1, 1]} : vector<4x132xf32> to vector<4x130xf32>
    %cst_6 = arith.constant dense<0.000000e+00> : vector<64x130xf32>
    %6 = tpu.matmul %4, %5, %cst_6 {dimension_numbers = #tpu.dot_dimension_numbers<[1], [0], [0], [1], [0, 0, 1, 1], [], []>} : vector<64x4xf32>, vector<4x130xf32>, vector<64x130xf32> -> vector<64x130xf32>
    %7 = arith.addf %2, %6 : vector<64x130xf32>
    %c1 = arith.constant 1 : index
    %c0_7 = arith.constant 0 : index
    %c0_8 = arith.constant 0 : index
    %8 = vector.load %arg3[%c1, %c0_7, %c0_8] : memref<3x64x4xf32, #tpu.memory_space<vmem>>, vector<1x64x4xf32>
    %9 = vector.shape_cast %8 : vector<1x64x4xf32> to vector<64x4xf32>
    %10 = vector.extract_strided_slice %1 {offsets = [0, 1], sizes = [4, 130], strides = [1, 1]} : vector<4x132xf32> to vector<4x130xf32>
    %cst_9 = arith.constant dense<0.000000e+00> : vector<64x130xf32>
    %11 = tpu.matmul %9, %10, %cst_9 {dimension_numbers = #tpu.dot_dimension_numbers<[1], [0], [0], [1], [0, 0, 1, 1], [], []>} : vector<64x4xf32>, vector<4x130xf32>, vector<64x130xf32> -> vector<64x130xf32>
    %12 = arith.addf %7, %11 : vector<64x130xf32>
    %c2 = arith.constant 2 : index
    %c0_10 = arith.constant 0 : index
    %c0_11 = arith.constant 0 : index
    %13 = vector.load %arg3[%c2, %c0_10, %c0_11] : memref<3x64x4xf32, #tpu.memory_space<vmem>>, vector<1x64x4xf32>
    %14 = vector.shape_cast %13 : vector<1x64x4xf32> to vector<64x4xf32>
    %15 = vector.extract_strided_slice %1 {offsets = [0, 2], sizes = [4, 130], strides = [1, 1]} : vector<4x132xf32> to vector<4x130xf32>
    %cst_12 = arith.constant dense<0.000000e+00> : vector<64x130xf32>
    %16 = tpu.matmul %14, %15, %cst_12 {dimension_numbers = #tpu.dot_dimension_numbers<[1], [0], [0], [1], [0, 0, 1, 1], [], []>} : vector<64x4xf32>, vector<4x130xf32>, vector<64x130xf32> -> vector<64x130xf32>
    %17 = arith.addf %12, %16 : vector<64x130xf32>
    %c0_13 = arith.constant 0 : index
    %c0_14 = arith.constant 0 : index
    %18 = vector.load %arg4[%c0_13, %c0_14] : memref<64x1xf32, #tpu.memory_space<vmem>>, vector<64x1xf32>
    %19 = vector.broadcast %18 : vector<64x1xf32> to vector<64x130xf32>
    %20 = arith.addf %17, %19 : vector<64x130xf32>
    %c128_i32 = arith.constant 128 : i32
    %21 = arith.muli %arg1, %c128_i32 : i32
    %c1_i32 = arith.constant 1 : i32
    %22 = arith.subi %21, %c1_i32 : i32
    %23 = tpu.iota {dimensions = array<i32: 1>} : vector<64x130xi32>
    %24 = vector.broadcast %22 : i32 to vector<64x130xi32>
    %25 = arith.addi %24, %23 : vector<64x130xi32>
    %c0_i32 = arith.constant 0 : i32
    %26 = vector.broadcast %c0_i32 : i32 to vector<64x130xi32>
    %27 = arith.cmpi sge, %25, %26 : vector<64x130xi32>
    %c256_i32 = arith.constant 256 : i32
    %28 = vector.broadcast %c256_i32 : i32 to vector<64x130xi32>
    %29 = arith.cmpi slt, %25, %28 : vector<64x130xi32>
    %30 = arith.andi %27, %29 : vector<64x130xi1>
    %cst_15 = arith.constant 0.000000e+00 : f32
    %31 = vector.broadcast %cst_15 : f32 to vector<64x130xf32>
    %32 = arith.select %30, %20, %31 : vector<64x130xi1>, vector<64x130xf32>
    %cst_16 = arith.constant 0.000000e+00 : f32
    %33 = vector.broadcast %cst_16 : f32 to vector<3x128xf32>
    %c0_17 = arith.constant 0 : index
    %c0_18 = arith.constant 0 : index
    %c0_19 = arith.constant 0 : index
    %34 = vector.load %arg5[%c0_17, %c0_18, %c0_19] : memref<3x3x64xf32, #tpu.memory_space<vmem>>, vector<1x3x64xf32>
    %35 = vector.shape_cast %34 : vector<1x3x64xf32> to vector<3x64xf32>
    %36 = vector.extract_strided_slice %32 {offsets = [0, 0], sizes = [64, 128], strides = [1, 1]} : vector<64x130xf32> to vector<64x128xf32>
    %cst_20 = arith.constant dense<0.000000e+00> : vector<3x128xf32>
    %37 = tpu.matmul %35, %36, %cst_20 {dimension_numbers = #tpu.dot_dimension_numbers<[1], [0], [0], [1], [0, 0, 1, 1], [], []>} : vector<3x64xf32>, vector<64x128xf32>, vector<3x128xf32> -> vector<3x128xf32>
    %38 = arith.addf %33, %37 : vector<3x128xf32>
    %c1_21 = arith.constant 1 : index
    %c0_22 = arith.constant 0 : index
    %c0_23 = arith.constant 0 : index
    %39 = vector.load %arg5[%c1_21, %c0_22, %c0_23] : memref<3x3x64xf32, #tpu.memory_space<vmem>>, vector<1x3x64xf32>
    %40 = vector.shape_cast %39 : vector<1x3x64xf32> to vector<3x64xf32>
    %41 = vector.extract_strided_slice %32 {offsets = [0, 1], sizes = [64, 128], strides = [1, 1]} : vector<64x130xf32> to vector<64x128xf32>
    %cst_24 = arith.constant dense<0.000000e+00> : vector<3x128xf32>
    %42 = tpu.matmul %40, %41, %cst_24 {dimension_numbers = #tpu.dot_dimension_numbers<[1], [0], [0], [1], [0, 0, 1, 1], [], []>} : vector<3x64xf32>, vector<64x128xf32>, vector<3x128xf32> -> vector<3x128xf32>
    %43 = arith.addf %38, %42 : vector<3x128xf32>
    %c2_25 = arith.constant 2 : index
    %c0_26 = arith.constant 0 : index
    %c0_27 = arith.constant 0 : index
    %44 = vector.load %arg5[%c2_25, %c0_26, %c0_27] : memref<3x3x64xf32, #tpu.memory_space<vmem>>, vector<1x3x64xf32>
    %45 = vector.shape_cast %44 : vector<1x3x64xf32> to vector<3x64xf32>
    %46 = vector.extract_strided_slice %32 {offsets = [0, 2], sizes = [64, 128], strides = [1, 1]} : vector<64x130xf32> to vector<64x128xf32>
    %cst_28 = arith.constant dense<0.000000e+00> : vector<3x128xf32>
    %47 = tpu.matmul %45, %46, %cst_28 {dimension_numbers = #tpu.dot_dimension_numbers<[1], [0], [0], [1], [0, 0, 1, 1], [], []>} : vector<3x64xf32>, vector<64x128xf32>, vector<3x128xf32> -> vector<3x128xf32>
    %48 = arith.addf %43, %47 : vector<3x128xf32>
    %c0_29 = arith.constant 0 : index
    %c0_30 = arith.constant 0 : index
    %49 = vector.load %arg6[%c0_29, %c0_30] : memref<3x1xf32, #tpu.memory_space<vmem>>, vector<3x1xf32>
    %50 = vector.broadcast %49 : vector<3x1xf32> to vector<3x128xf32>
    %51 = arith.addf %48, %50 : vector<3x128xf32>
    %c0_31 = arith.constant 0 : index
    %c0_32 = arith.constant 0 : index
    %c0_33 = arith.constant 0 : index
    %52 = vector.load %arg7[%c0_31, %c0_32, %c0_33] : memref<1x3x128xf32, #tpu.memory_space<vmem>>, vector<1x3x128xf32>
    %53 = vector.shape_cast %52 : vector<1x3x128xf32> to vector<3x128xf32>
    %54 = vector.shape_cast %51 : vector<3x128xf32> to vector<1x3x128xf32>
    tpu.vector_store %arg7[%c0_31, %c0_32, %c0_33], %54 {strides = array<i32>} : memref<1x3x128xf32, #tpu.memory_space<vmem>>, vector<1x3x128xf32>,
    return
  }
  func.func @transform_0(%arg0: i32, %arg1: i32) -> (i32, i32, i32, i32) {
    %c0_i32 = arith.constant 0 : i32
    %c0_i32_0 = arith.constant 0 : i32
    %c0_i32_1 = arith.constant 0 : i32
    return %arg0, %arg1, %c0_i32, %c0_i32_0 : i32, i32, i32, i32
  }
  func.func @transform_1(%arg0: i32, %arg1: i32) -> (i32, i32, i32) {
    %c0_i32 = arith.constant 0 : i32
    %c0_i32_0 = arith.constant 0 : i32
    %c0_i32_1 = arith.constant 0 : i32
    %c0_i32_2 = arith.constant 0 : i32
    return %c0_i32, %c0_i32_0, %c0_i32_1 : i32, i32, i32
  }
  func.func @transform_2(%arg0: i32, %arg1: i32) -> (i32, i32) {
    %c0_i32 = arith.constant 0 : i32
    %c0_i32_0 = arith.constant 0 : i32
    %c0_i32_1 = arith.constant 0 : i32
    return %c0_i32, %c0_i32_0 : i32, i32
  }
  func.func @transform_3(%arg0: i32, %arg1: i32) -> (i32, i32, i32) {
    %c0_i32 = arith.constant 0 : i32
    %c0_i32_0 = arith.constant 0 : i32
    %c0_i32_1 = arith.constant 0 : i32
    %c0_i32_2 = arith.constant 0 : i32
    return %c0_i32, %c0_i32_0, %c0_i32_1 : i32, i32, i32
  }
  func.func @transform_4(%arg0: i32, %arg1: i32) -> (i32, i32) {
    %c0_i32 = arith.constant 0 : i32
    %c0_i32_0 = arith.constant 0 : i32
    %c0_i32_1 = arith.constant 0 : i32
    return %c0_i32, %c0_i32_0 : i32, i32
  }
  func.func @transform_5(%arg0: i32, %arg1: i32) -> (i32, i32, i32) {
    %c0_i32 = arith.constant 0 : i32
    %c0_i32_0 = arith.constant 0 : i32
    return %arg0, %c0_i32, %arg1 : i32, i32, i32
  }
}

</mosaic_0001>

<llo_original>
// kernel: spec2dcnn_forward.1
$region0: #{spec2dcnn_forward.1}
  #allocation0 [shape = 'u32[]', space=smem, size = 0x4, offset = 0x4, fixed_abs, tag = 'smem constant byte address 0x4 - core index']
  #allocation1 [shape = 'u32[144,128]{1,0:T(1,128)}', space=vmem, size = 0x12000, scoped, tag = 'internal scratch']
  %s0 = inlined_call_operand.vmem [shape: f32[2,2,4,132], index: 0, kind: input, shape index: {}]
  %s1 = inlined_call_operand.vmem [shape: f32[3,64,4], index: 1, kind: input, shape index: {}]
  %s2 = inlined_call_operand.vmem [shape: f32[64,1], index: 2, kind: input, shape index: {}]
  %s3 = inlined_call_operand.vmem [shape: f32[3,3,64], index: 3, kind: input, shape index: {}]
  %s4 = inlined_call_operand.vmem [shape: f32[3,1], index: 4, kind: input, shape index: {}]
  %s5 = inlined_call_operand.vmem [shape: f32[2,3,256], index: 5, kind: output, shape index: {}]
  %s6 = sld [smem:[#allocation0]]
  $region53: #{spec2dcnn_forward.1} parent=0
    _
  %s8 = ssub.s32 1, %s6
  %s9 = scalar_select 0, %s8, %s6
  loop: start=0, step=1, limit=6
  $region2: #{spec2dcnn_forward.1} parent=0 // loop_pre_header
    _
  $region3: #{spec2dcnn_forward.1} parent=0 // loop_header
    %s11 = sphi 0, %s15
    %p12 = scmp.ge.s32.totalorder %s11, 6
    %s18 = sphi 0, %s30
    %s19 = sphi 0, %s26
    %s20 = sphi 0, %s18
    %s21 = sphi 0, %s19
    %s22 = sphi 0, %s20
    %s23 = sphi 0, %s21
    %s35 = sphi 0, %s37
    %s38 = sphi 0, %s35
    %s39 = sphi 0, %s38
    %s55 = sphi 0, %s39
    %s59 = sphi 0, %s59
    %s61 = sphi 0, %s59
    %s62 = sphi 0, %s61
    %s76 = sphi 0, %s62
    %s80 = sphi 0, %s80
    %s82 = sphi 0, %s80
    %s83 = sphi 0, %s82
    %s97 = sphi 0, %s83
    %s101 = sphi 0, %s101
    %s103 = sphi 0, %s101
    %s104 = sphi 0, %s103
    %s118 = sphi 0, %s104
    %s122 = sphi 0, %s122
    %s124 = sphi 0, %s122
    %s125 = sphi 0, %s124
    %s139 = sphi 0, %s125
    %s147 = sphi 0, %s149
    %s150 = sphi 0, %s147
    %s151 = sphi 0, %s150
    %s167 = sphi 0, %s151
  $region4: #{spec2dcnn_forward.1} parent=0 // loop_header_branch
    %14 = sbr.rel (%p12) target = $region8
  $region5: #{spec2dcnn_forward.1} parent=0 // loop_body
    %s16 = ssub.s32 %s11, 1
    %s17 = ssub.s32 %s11, 2
    %s24 = sadd.s32 1, %s19
    %p25 = scmp.ge.s32.totalorder %s24, 2
    %s26 = scalar_select %p25, 0, %s24
    %s27 = sadd.s32 1, %s18
    %s28 = scalar_select %p25, %s27, %s18
    %p29 = scmp.ge.s32.totalorder %s28, 2
    %s30 = scalar_select %p29, 0, %s28
    %s31 = ssub.s32 %s18, %s30
    %s32 = ssub.s32 %s19, %s26
    %s33 = sor.u32 %s31, %s32
    %p34 = scmp.eq.s32.totalorder %s33, 0
    %s36 = sadd.s32 %s35, 1
    %s37 = scalar_select %p34, %s35, %s36
    %p40 = pneg %p34
    %p41 = scmp.eq.s32.totalorder %s11, 3
    %p42 = por %p40, %p41
    %p43 = scmp.ne.s32.totalorder %s35, %s38
    %p44 = scmp.eq.s32.totalorder %s11, 0
    %p45 = por %p43, %p44
    %p46 = scmp.ne.s32.totalorder %s35, %s38
    %p47 = scmp.eq.s32.totalorder %s16, 3
    %p48 = por %p46, %p47
    %p49 = scmp.ne.s32.totalorder %s38, %s39
    %p50 = scmp.eq.s32.totalorder %s16, 0
    %p51 = por %p49, %p50
    %p52 = scmp.ne.s32.totalorder %s38, %s39
    %p53 = scmp.eq.s32.totalorder %s17, 3
    %p54 = por %p52, %p53
    %p56 = scmp.ne.s32.totalorder %s39, %s55
    %p57 = scmp.eq.s32.totalorder %s17, 0
    %p58 = por %p56, %p57
    %s60 = sadd.s32 %s59, 1
    %p63 = scmp.eq.s32.totalorder %s11, 3
    %p64 = scmp.ne.s32.totalorder %s59, %s61
    %p65 = scmp.eq.s32.totalorder %s11, 0
    %p66 = por %p64, %p65
    %p67 = scmp.ne.s32.totalorder %s59, %s61
    %p68 = scmp.eq.s32.totalorder %s16, 3
    %p69 = por %p67, %p68
    %p70 = scmp.ne.s32.totalorder %s61, %s62
    %p71 = scmp.eq.s32.totalorder %s16, 0
    %p72 = por %p70, %p71
    %p73 = scmp.ne.s32.totalorder %s61, %s62
    %p74 = scmp.eq.s32.totalorder %s17, 3
    %p75 = por %p73, %p74
    %p77 = scmp.ne.s32.totalorder %s62, %s76
    %p78 = scmp.eq.s32.totalorder %s17, 0
    %p79 = por %p77, %p78
    %s81 = sadd.s32 %s80, 1
    %p84 = scmp.eq.s32.totalorder %s11, 3
    %p85 = scmp.ne.s32.totalorder %s80, %s82
    %p86 = scmp.eq.s32.totalorder %s11, 0
    %p87 = por %p85, %p86
    %p88 = scmp.ne.s32.totalorder %s80, %s82
    %p89 = scmp.eq.s32.totalorder %s16, 3
    %p90 = por %p88, %p89
    %p91 = scmp.ne.s32.totalorder %s82, %s83
    %p92 = scmp.eq.s32.totalorder %s16, 0
    %p93 = por %p91, %p92
    %p94 = scmp.ne.s32.totalorder %s82, %s83
    %p95 = scmp.eq.s32.totalorder %s17, 3
    %p96 = por %p94, %p95
    %p98 = scmp.ne.s32.totalorder %s83, %s97
    %p99 = scmp.eq.s32.totalorder %s17, 0
    %p100 = por %p98, %p99
    %s102 = sadd.s32 %s101, 1
    %p105 = scmp.eq.s32.totalorder %s11, 3
    %p106 = scmp.ne.s32.totalorder %s101, %s103
    %p107 = scmp.eq.s32.totalorder %s11, 0
    %p108 = por %p106, %p107
    %p109 = scmp.ne.s32.totalorder %s101, %s103
    %p110 = scmp.eq.s32.totalorder %s16, 3
    %p111 = por %p109, %p110
    %p112 = scmp.ne.s32.totalorder %s103, %s104
    %p113 = scmp.eq.s32.totalorder %s16, 0
    %p114 = por %p112, %p113
    %p115 = scmp.ne.s32.totalorder %s103, %s104
    %p116 = scmp.eq.s32.totalorder %s17, 3
    %p117 = por %p115, %p116
    %p119 = scmp.ne.s32.totalorder %s104, %s118
    %p120 = scmp.eq.s32.totalorder %s17, 0
    %p121 = por %p119, %p120
    %s123 = sadd.s32 %s122, 1
    %p126 = scmp.eq.s32.totalorder %s11, 3
    %p127 = scmp.ne.s32.totalorder %s122, %s124
    %p128 = scmp.eq.s32.totalorder %s11, 0
    %p129 = por %p127, %p128
    %p130 = scmp.ne.s32.totalorder %s122, %s124
    %p131 = scmp.eq.s32.totalorder %s16, 3
    %p132 = por %p130, %p131
    %p133 = scmp.ne.s32.totalorder %s124, %s125
    %p134 = scmp.eq.s32.totalorder %s16, 0
    %p135 = por %p133, %p134
    %p136 = scmp.ne.s32.totalorder %s124, %s125
    %p137 = scmp.eq.s32.totalorder %s17, 3
    %p138 = por %p136, %p137
    %p140 = scmp.ne.s32.totalorder %s125, %s139
    %p141 = scmp.eq.s32.totalorder %s17, 0
    %p142 = por %p140, %p141
    %s143 = ssub.s32 %s18, %s30
    %s144 = ssub.s32 %s19, %s26
    %s145 = sor.u32 %s143, %s144
    %p146 = scmp.eq.s32.totalorder %s145, 0
    %s148 = sadd.s32 %s147, 1
    %s149 = scalar_select %p146, %s147, %s148
    %p152 = pneg %p146
    %p153 = scmp.eq.s32.totalorder %s11, 3
    %p154 = por %p152, %p153
    %p155 = scmp.ne.s32.totalorder %s147, %s150
    %p156 = scmp.eq.s32.totalorder %s11, 0
    %p157 = por %p155, %p156
    %p158 = scmp.ne.s32.totalorder %s147, %s150
    %p159 = scmp.eq.s32.totalorder %s16, 3
    %p160 = por %p158, %p159
    %p161 = scmp.ne.s32.totalorder %s150, %s151
    %p162 = scmp.eq.s32.totalorder %s16, 0
    %p163 = por %p161, %p162
    %p164 = scmp.ne.s32.totalorder %s150, %s151
    %p165 = scmp.eq.s32.totalorder %s17, 3
    %p166 = por %p164, %p165
    %p168 = scmp.ne.s32.totalorder %s151, %s167
    %p169 = scmp.eq.s32.totalorder %s17, 0
    %p170 = por %p168, %p169
    %p171 = scmp.le.s32.totalorder 1, %s11
    %p172 = scmp.lt.s32.totalorder %s11, 5
    %p173 = pnand %p171, %p172
    %p174 = pneg %p173
    // Predicated region
    $region9: #{spec2dcnn_forward.1} parent=5 // pred_check
      _
    $region10: #{spec2dcnn_forward.1} parent=5 // pred_check_branch
      %176 = sbr.rel (%p173) target = $region12
    $region11: #{spec2dcnn_forward.1} parent=5 // pred_region
      %s177 = ssub.s32 %s11, 1
      // Predicated region
      $region13: #{spec2dcnn_forward.1} parent=11 // pred_check
        %p178 = pneg %p72
      $region14: #{spec2dcnn_forward.1} parent=11 // pred_check_branch
        %180 = sbr.rel (%p178) target = $region16
      $region15: #{spec2dcnn_forward.1} parent=11 // pred_region
        _
      $region16: #{spec2dcnn_forward.1} parent=11 // pred_fallthru
        _
      // Predicated region
      $region17: #{spec2dcnn_forward.1} parent=11 // pred_check
        %p181 = pneg %p93
      $region18: #{spec2dcnn_forward.1} parent=11 // pred_check_branch
        %183 = sbr.rel (%p181) target = $region20
      $region19: #{spec2dcnn_forward.1} parent=11 // pred_region
        _
      $region20: #{spec2dcnn_forward.1} parent=11 // pred_fallthru
        _
      // Predicated region
      $region21: #{spec2dcnn_forward.1} parent=11 // pred_check
        %p184 = pneg %p114
      $region22: #{spec2dcnn_forward.1} parent=11 // pred_check_branch
        %186 = sbr.rel (%p184) target = $region24
      $region23: #{spec2dcnn_forward.1} parent=11 // pred_region
        _
      $region24: #{spec2dcnn_forward.1} parent=11 // pred_fallthru
        _
      // Predicated region
      $region25: #{spec2dcnn_forward.1} parent=11 // pred_check
        %p187 = pneg %p135
      $region26: #{spec2dcnn_forward.1} parent=11 // pred_check_branch
        %189 = sbr.rel (%p187) target = $region28
      $region27: #{spec2dcnn_forward.1} parent=11 // pred_region
        _
      $region28: #{spec2dcnn_forward.1} parent=11 // pred_fallthru
        _
    $region12: #{spec2dcnn_forward.1} parent=5 // pred_fallthru
      _
    %p190 = scmp.lt.s32.totalorder %s11, 4
    // Predicated region
    $region29: #{spec2dcnn_forward.1} parent=5 // pred_check
      %p191 = pneg %p190
    $region30: #{spec2dcnn_forward.1} parent=5 // pred_check_branch
      %193 = sbr.rel (%p191) target = $region32
    $region31: #{spec2dcnn_forward.1} parent=5 // pred_region
      // Predicated region
      $region33: #{spec2dcnn_forward.1} parent=31 // pred_check
        %p194 = pneg %p45
      $region34: #{spec2dcnn_forward.1} parent=31 // pred_check_branch
        %196 = sbr.rel (%p194) target = $region36
      $region35: #{spec2dcnn_forward.1} parent=31 // pred_region
        %p197 = scmp.lt.s32.totalorder %s18, 1
        %s198 = scalar_select %p197, %s18, 1
        %p199 = scmp.lt.s32.totalorder %s19, 1
        %s200 = scalar_select %p199, %s19, 1
        %s201 = smul.addr %s200, 2
        %s202 = smul.addr %s198, 4
        %s203 = sadd.s32 %s201, %s202
        %s204 = smul.addr %s203, 4
        %s205 = scalar_lea.vmem %s0, %s204
      $region36: #{spec2dcnn_forward.1} parent=31 // pred_fallthru
        _
    $region32: #{spec2dcnn_forward.1} parent=5 // pred_fallthru
      _
    %p206 = scmp.le.s32.totalorder 1, %s11
    %p207 = scmp.lt.s32.totalorder %s11, 5
    %p208 = pnand %p206, %p207
    %p209 = pneg %p208
    // Predicated region
    $region37: #{spec2dcnn_forward.1} parent=5 // pred_check
      _
    $region38: #{spec2dcnn_forward.1} parent=5 // pred_check_branch
      %211 = sbr.rel (%p208) target = $region40
    $region39: #{spec2dcnn_forward.1} parent=5 // pred_region
      %s212 = ssub.s32 %s11, 1
      %p213 = scmp.lt.s32.totalorder %s20, 1
      %s214 = scalar_select %p213, %s20, 1
      %p215 = scmp.lt.s32.totalorder %s21, 1
      %s216 = scalar_select %p215, %s21, 1
      %s217 = smul.addr %s216, 2
      %s218 = smul.addr %s214, 4
      %s219 = sadd.s32 %s217, %s218
      %s220 = smul.addr %s219, 4
      %s221 = scalar_lea.vmem %s0, %s220
      %p222 = pneg %p51
      %p223 = pneg %p48
      %p224 = pneg %p72
      %p225 = pneg %p69
      %p226 = pneg %p93
      %p227 = pneg %p90
      %p228 = pneg %p114
      %p229 = pneg %p111
      %p230 = pneg %p135
      %p231 = pneg %p132
      %p232 = pneg %p163
      %p233 = pneg %p160
      %p234 = scmp.lt.s32.totalorder %s20, 1
      %s235 = scalar_select %p234, %s20, 1
      %p236 = scmp.lt.s32.totalorder %s21, 1
      %s237 = scalar_select %p236, %s21, 1
      %s238 = smul.addr %s235, 2
      %s239 = sadd.s32 %s237, %s238
      %s240 = smul.addr %s239, 4
      %s241 = scalar_lea.vmem %s5, %s240
      %p242 = scmp.lt.s32.totalorder %s20, 1
      %s243 = scalar_select %p242, %s20, 1
      %p244 = scmp.lt.s32.totalorder %s21, 1
      %s245 = scalar_select %p244, %s21, 1
      %s246 = smul.addr %s245, 2
      %s247 = smul.addr %s243, 4
      %s248 = sadd.s32 %s246, %s247
      %s249 = smul.addr %s248, 4
      %s250 = scalar_lea.vmem %s0, %s249
      %p251 = scmp.lt.s32.totalorder %s20, 1
      %s252 = scalar_select %p251, %s20, 1
      %p253 = scmp.lt.s32.totalorder %s21, 1
      %s254 = scalar_select %p253, %s21, 1
      %s255 = smul.addr %s252, 2
      %s256 = sadd.s32 %s254, %s255
      %s257 = smul.addr %s256, 4
      %s258 = scalar_lea.vmem %s5, %s257
      %v259 = vld [vmem:[%s250] sm:$0xff]
      %v260 = vld [vmem:[%s1] sm:$0xff]
      %v261 = vld [vmem:[%s1 + $0x8] sm:$0xff]
      %v262 = vld [vmem:[%s1 + $0x10] sm:$0xff]
      %v263 = vld [vmem:[%s1 + $0x18] sm:$0xff]
      %v264 = vld [vmem:[%s1 + $0x20] sm:$0xff]
      %v265 = vld [vmem:[%s1 + $0x28] sm:$0xff]
      %v266 = vld [vmem:[%s1 + $0x30] sm:$0xff]
      %v267 = vld [vmem:[%s1 + $0x38] sm:$0xff]
      %s268 = scalar_lea.vmem %s1, 64
      %v269 = vld [vmem:[%s268] sm:$0xff]
      %v270 = vld [vmem:[%s268 + $0x8] sm:$0xff]
      %v271 = vld [vmem:[%s268 + $0x10] sm:$0xff]
      %v272 = vld [vmem:[%s268 + $0x18] sm:$0xff]
      %v273 = vld [vmem:[%s268 + $0x20] sm:$0xff]
      %v274 = vld [vmem:[%s268 + $0x28] sm:$0xff]
      %v275 = vld [vmem:[%s268 + $0x30] sm:$0xff]
      %v276 = vld [vmem:[%s268 + $0x38] sm:$0xff]
      %v278 = vcombine.high %v259, %v259
      %279 = vrot.lane.b32.xlu0 %v259, 127
      %v280 = vpop.permute.xlu0 %279
      %281 = vrot.lane.b32.xlu0 %v278, 127
      %v282 = vpop.permute.xlu0 %281
      %vm283 = vcmask 1039360
      %v284 = vsel %vm283, %v280, %v282
      %vm285 = vcmask 31744
      %v287 = vsel %vm285, %v269, 0
      %v290 = vsel %vm285, %v270, 0
      %v293 = vsel %vm285, %v271, 0
      %v296 = vsel %vm285, %v272, 0
      %v299 = vsel %vm285, %v273, 0
      %v302 = vsel %vm285, %v274, 0
      %v305 = vsel %vm285, %v275, 0
      %v308 = vsel %vm285, %v276, 0
      %vm310 = vcmask 1043456
      %v311 = vsel %vm310, %v284, 0
      %v313 = vsel %vm310, %v282, 0
      %315 = vmatprep.subr.mxu0 0.0
      %316 = vmatpush1.msra.mxu0 0.0
      %317 = vmatprep.subr.mxu0 0.0
      %318 = vmatpush1.msra.mxu0 0.0
      %319 = vmatprep.subr.mxu0 0.0
      %320 = vmatpush1.msra.mxu0 0.0
      %321 = vmatprep.subr.mxu0 0.0
      %322 = vmatpush1.msra.mxu0 0.0
      %323 = vmatprep.subr.mxu0 0.0
      %324 = vmatpush1.msra.mxu0 0.0
      %325 = vmatprep.subr.mxu0 0.0
      %326 = vmatpush1.msra.mxu0 0.0
      %327 = vmatprep.subr.mxu0 0.0
      %328 = vmatpush1.msra.mxu0 0.0
      %329 = vmatprep.subr.mxu0 0.0
      %330 = vmatpush1.msra.mxu0 0.0
      %331 = vmatprep.subr.mxu0 0.0
      %332 = vmatpush1.msra.mxu0 0.0
      %333 = vmatprep.subr.mxu0 0.0
      %334 = vmatpush1.msra.mxu0 0.0
      %335 = vmatprep.subr.mxu0 0.0
      %336 = vmatpush1.msra.mxu0 0.0
      %337 = vmatprep.subr.mxu0 0.0
      %338 = vmatpush1.msra.mxu0 0.0
      %339 = vmatprep.subr.mxu0 0.0
      %340 = vmatpush1.msra.mxu0 0.0
      %341 = vmatprep.subr.mxu0 0.0
      %342 = vmatpush1.msra.mxu0 0.0
      %343 = vmatprep.subr.mxu0 0.0
      %344 = vmatpush1.msra.mxu0 0.0
      %345 = vmatprep.subr.mxu0 %v313
      %346 = vmatpush1.msra.mxu0 %v311
      %347 = vmatprep.subr.mxu0 0.0
      %348 = vmatpush2.msra.mxu0 0.0
      %349 = vmatprep.subr.mxu0 0.0
      %350 = vmatpush2.msra.mxu0 0.0
      %351 = vmatprep.subr.mxu0 0.0
      %352 = vmatpush2.msra.mxu0 0.0
      %353 = vmatprep.subr.mxu0 0.0
      %354 = vmatpush2.msra.mxu0 0.0
      %355 = vmatprep.subr.mxu0 0.0
      %356 = vmatpush2.msra.mxu0 0.0
      %357 = vmatprep.subr.mxu0 0.0
      %358 = vmatpush2.msra.mxu0 0.0
      %359 = vmatprep.subr.mxu0 0.0
      %360 = vmatpush2.msra.mxu0 0.0
      %361 = vmatprep.subr.mxu0 0.0
      %362 = vmatpush2.msra.mxu0 0.0
      %363 = vmatprep.subr.mxu0 0.0
      %364 = vmatpush2.msra.mxu0 0.0
      %365 = vmatprep.subr.mxu0 0.0
      %366 = vmatpush2.msra.mxu0 0.0
      %367 = vmatprep.subr.mxu0 0.0
      %368 = vmatpush2.msra.mxu0 0.0
      %369 = vmatprep.subr.mxu0 0.0
      %370 = vmatpush2.msra.mxu0 0.0
      %371 = vmatprep.subr.mxu0 0.0
      %372 = vmatpush2.msra.mxu0 0.0
      %373 = vmatprep.subr.mxu0 0.0
      %374 = vmatpush2.msra.mxu0 0.0
      %375 = vmatprep.subr.mxu0 0.0
      %376 = vmatpush2.msra.mxu0 0.0
      %377 = vmatprep.subr.mxu0 0.0
      %378 = vmatpush2.msra.mxu0 0.0
      %379 = vmatprep.mubr.f32.mxu0 0.0
      %380 = vmatmul.mubr.f32.gmra.mxu0 %v287
      %v381 = vpop.f32.mrf.mxu0
      %v382 = vadd.f32 0.0, %v381
      %v383 = vpop.f32.mrf.mxu0
      %v384 = vadd.f32 0.0, %v383
      %385 = vmatprep.mubr.f32.mxu0 0.0
      %386 = vmatmul.mubr.f32.gmra.mxu0 %v290
      %v387 = vpop.f32.mrf.mxu0
      %v388 = vadd.f32 0.0, %v387
      %v389 = vpop.f32.mrf.mxu0
      %v390 = vadd.f32 0.0, %v389
      %391 = vmatprep.mubr.f32.mxu0 0.0
      %392 = vmatmul.mubr.f32.gmra.mxu0 %v293
      %v393 = vpop.f32.mrf.mxu0
      %v394 = vadd.f32 0.0, %v393
      %v395 = vpop.f32.mrf.mxu0
      %v396 = vadd.f32 0.0, %v395
      %397 = vmatprep.mubr.f32.mxu0 0.0
      %398 = vmatmul.mubr.f32.gmra.mxu0 %v296
      %v399 = vpop.f32.mrf.mxu0
      %v400 = vadd.f32 0.0, %v399
      %v401 = vpop.f32.mrf.mxu0
      %v402 = vadd.f32 0.0, %v401
      %403 = vmatprep.mubr.f32.mxu0 0.0
      %404 = vmatmul.mubr.f32.gmra.mxu0 %v299
      %v405 = vpop.f32.mrf.mxu0
      %v406 = vadd.f32 0.0, %v405
      %v407 = vpop.f32.mrf.mxu0
      %v408 = vadd.f32 0.0, %v407
      %409 = vmatprep.mubr.f32.mxu0 0.0
      %410 = vmatmul.mubr.f32.gmra.mxu0 %v302
      %v411 = vpop.f32.mrf.mxu0
      %v412 = vadd.f32 0.0, %v411
      %v413 = vpop.f32.mrf.mxu0
      %v414 = vadd.f32 0.0, %v413
      %415 = vmatprep.mubr.f32.mxu0 0.0
      %416 = vmatmul.mubr.f32.gmra.mxu0 %v305
      %v417 = vpop.f32.mrf.mxu0
      %v418 = vadd.f32 0.0, %v417
      %v419 = vpop.f32.mrf.mxu0
      %v420 = vadd.f32 0.0, %v419
      %421 = vmatprep.mubr.f32.mxu0 0.0
      %422 = vmatmul.mubr.f32.gmra.mxu0 %v308
      %v423 = vpop.f32.mrf.mxu0
      %v424 = vadd.f32 0.0, %v423
      %v425 = vpop.f32.mrf.mxu0
      %v426 = vadd.f32 0.0, %v425
      %427 = vdwg.mxu0
      %v429 = vsel %vm285, %v260, 0
      %v432 = vsel %vm285, %v261, 0
      %v435 = vsel %vm285, %v262, 0
      %v438 = vsel %vm285, %v263, 0
      %v441 = vsel %vm285, %v264, 0
      %v444 = vsel %vm285, %v265, 0
      %v447 = vsel %vm285, %v266, 0
      %v450 = vsel %vm285, %v267, 0
      %v452 = vsel %vm310, %v259, 0
      %v454 = vsel %vm310, %v278, 0
      %456 = vmatprep.subr.mxu0 0.0
      %457 = vmatpush1.msra.mxu0 0.0
      %458 = vmatprep.subr.mxu0 0.0
      %459 = vmatpush1.msra.mxu0 0.0
      %460 = vmatprep.subr.mxu0 0.0
      %461 = vmatpush1.msra.mxu0 0.0
      %462 = vmatprep.subr.mxu0 0.0
      %463 = vmatpush1.msra.mxu0 0.0
      %464 = vmatprep.subr.mxu0 0.0
      %465 = vmatpush1.msra.mxu0 0.0
      %466 = vmatprep.subr.mxu0 0.0
      %467 = vmatpush1.msra.mxu0 0.0
      %468 = vmatprep.subr.mxu0 0.0
      %469 = vmatpush1.msra.mxu0 0.0
      %470 = vmatprep.subr.mxu0 0.0
      %471 = vmatpush1.msra.mxu0 0.0
      %472 = vmatprep.subr.mxu0 0.0
      %473 = vmatpush1.msra.mxu0 0.0
      %474 = vmatprep.subr.mxu0 0.0
      %475 = vmatpush1.msra.mxu0 0.0
      %476 = vmatprep.subr.mxu0 0.0
      %477 = vmatpush1.msra.mxu0 0.0
      %478 = vmatprep.subr.mxu0 0.0
      %479 = vmatpush1.msra.mxu0 0.0
      %480 = vmatprep.subr.mxu0 0.0
      %481 = vmatpush1.msra.mxu0 0.0
      %482 = vmatprep.subr.mxu0 0.0
      %483 = vmatpush1.msra.mxu0 0.0
      %484 = vmatprep.subr.mxu0 0.0
      %485 = vmatpush1.msra.mxu0 0.0
      %486 = vmatprep.subr.mxu0 %v454
      %487 = vmatpush1.msra.mxu0 %v452
      %488 = vmatprep.subr.mxu0 0.0
      %489 = vmatpush2.msra.mxu0 0.0
      %490 = vmatprep.subr.mxu0 0.0
      %491 = vmatpush2.msra.mxu0 0.0
      %492 = vmatprep.subr.mxu0 0.0
      %493 = vmatpush2.msra.mxu0 0.0
      %494 = vmatprep.subr.mxu0 0.0
      %495 = vmatpush2.msra.mxu0 0.0
      %496 = vmatprep.subr.mxu0 0.0
      %497 = vmatpush2.msra.mxu0 0.0
      %498 = vmatprep.subr.mxu0 0.0
      %499 = vmatpush2.msra.mxu0 0.0
      %500 = vmatprep.subr.mxu0 0.0
      %501 = vmatpush2.msra.mxu0 0.0
      %502 = vmatprep.subr.mxu0 0.0
      %503 = vmatpush2.msra.mxu0 0.0
      %504 = vmatprep.subr.mxu0 0.0
      %505 = vmatpush2.msra.mxu0 0.0
      %506 = vmatprep.subr.mxu0 0.0
      %507 = vmatpush2.msra.mxu0 0.0
      %508 = vmatprep.subr.mxu0 0.0
      %509 = vmatpush2.msra.mxu0 0.0
      %510 = vmatprep.subr.mxu0 0.0
      %511 = vmatpush2.msra.mxu0 0.0
      %512 = vmatprep.subr.mxu0 0.0
      %513 = vmatpush2.msra.mxu0 0.0
      %514 = vmatprep.subr.mxu0 0.0
      %515 = vmatpush2.msra.mxu0 0.0
      %516 = vmatprep.subr.mxu0 0.0
      %517 = vmatpush2.msra.mxu0 0.0
      %518 = vmatprep.subr.mxu0 0.0
      %519 = vmatpush2.msra.mxu0 0.0
      %520 = vmatprep.mubr.f32.mxu0 0.0
      %521 = vmatmul.mubr.f32.gmra.mxu0 %v429
      %v522 = vpop.f32.mrf.mxu0
      %v523 = vadd.f32 %v382, %v522
      %v524 = vpop.f32.mrf.mxu0
      %v525 = vadd.f32 %v384, %v524
      %526 = vmatprep.mubr.f32.mxu0 0.0
      %527 = vmatmul.mubr.f32.gmra.mxu0 %v432
      %v528 = vpop.f32.mrf.mxu0
      %v529 = vadd.f32 %v388, %v528
      %v530 = vpop.f32.mrf.mxu0
      %v531 = vadd.f32 %v390, %v530
      %532 = vmatprep.mubr.f32.mxu0 0.0
      %533 = vmatmul.mubr.f32.gmra.mxu0 %v435
      %v534 = vpop.f32.mrf.mxu0
      %v535 = vadd.f32 %v394, %v534
      %v536 = vpop.f32.mrf.mxu0
      %v537 = vadd.f32 %v396, %v536
      %538 = vmatprep.mubr.f32.mxu0 0.0
      %539 = vmatmul.mubr.f32.gmra.mxu0 %v438
      %v540 = vpop.f32.mrf.mxu0
      %v541 = vadd.f32 %v400, %v540
      %v542 = vpop.f32.mrf.mxu0
      %v543 = vadd.f32 %v402, %v542
      %544 = vmatprep.mubr.f32.mxu0 0.0
      %545 = vmatmul.mubr.f32.gmra.mxu0 %v441
      %v546 = vpop.f32.mrf.mxu0
      %v547 = vadd.f32 %v406, %v546
      %v548 = vpop.f32.mrf.mxu0
      %v549 = vadd.f32 %v408, %v548
      %550 = vmatprep.mubr.f32.mxu0 0.0
      %551 = vmatmul.mubr.f32.gmra.mxu0 %v444
      %v552 = vpop.f32.mrf.mxu0
      %v553 = vadd.f32 %v412, %v552
      %v554 = vpop.f32.mrf.mxu0
      %v555 = vadd.f32 %v414, %v554
      %556 = vmatprep.mubr.f32.mxu0 0.0
      %557 = vmatmul.mubr.f32.gmra.mxu0 %v447
      %v558 = vpop.f32.mrf.mxu0
      %v559 = vadd.f32 %v418, %v558
      %v560 = vpop.f32.mrf.mxu0
      %v561 = vadd.f32 %v420, %v560
      %562 = vmatprep.mubr.f32.mxu0 0.0
      %563 = vmatmul.mubr.f32.gmra.mxu0 %v450
      %v564 = vpop.f32.mrf.mxu0
      %v565 = vadd.f32 %v424, %v564
      %v566 = vpop.f32.mrf.mxu0
      %v567 = vadd.f32 %v426, %v566
      %568 = vdwg.mxu0
      %s569 = scalar_lea.vmem %s1, 128
      %v570 = vld [vmem:[%s569] sm:$0xff]
      %v571 = vld [vmem:[%s569 + $0x8] sm:$0xff]
      %v572 = vld [vmem:[%s569 + $0x10] sm:$0xff]
      %v573 = vld [vmem:[%s569 + $0x18] sm:$0xff]
      %v574 = vld [vmem:[%s569 + $0x20] sm:$0xff]
      %v575 = vld [vmem:[%s569 + $0x28] sm:$0xff]
      %v576 = vld [vmem:[%s569 + $0x30] sm:$0xff]
      %v577 = vld [vmem:[%s569 + $0x38] sm:$0xff]
      %578 = vrot.lane.b32.xlu0 %v259, 126
      %v579 = vpop.permute.xlu0 %578
      %580 = vrot.lane.b32.xlu0 %v278, 126
      %v581 = vpop.permute.xlu0 %580
      %vm582 = vcmask 1031168
      %v583 = vsel %vm582, %v579, %v581
      %v585 = vsel %vm285, %v570, 0
      %v588 = vsel %vm285, %v571, 0
      %v591 = vsel %vm285, %v572, 0
      %v594 = vsel %vm285, %v573, 0
      %v597 = vsel %vm285, %v574, 0
      %v600 = vsel %vm285, %v575, 0
      %v603 = vsel %vm285, %v576, 0
      %v606 = vsel %vm285, %v577, 0
      %v608 = vsel %vm310, %v583, 0
      %v610 = vsel %vm310, %v581, 0
      %612 = vmatprep.subr.mxu0 0.0
      %613 = vmatpush1.msra.mxu0 0.0
      %614 = vmatprep.subr.mxu0 0.0
      %615 = vmatpush1.msra.mxu0 0.0
      %616 = vmatprep.subr.mxu0 0.0
      %617 = vmatpush1.msra.mxu0 0.0
      %618 = vmatprep.subr.mxu0 0.0
      %619 = vmatpush1.msra.mxu0 0.0
      %620 = vmatprep.subr.mxu0 0.0
      %621 = vmatpush1.msra.mxu0 0.0
      %622 = vmatprep.subr.mxu0 0.0
      %623 = vmatpush1.msra.mxu0 0.0
      %624 = vmatprep.subr.mxu0 0.0
      %625 = vmatpush1.msra.mxu0 0.0
      %626 = vmatprep.subr.mxu0 0.0
      %627 = vmatpush1.msra.mxu0 0.0
      %628 = vmatprep.subr.mxu0 0.0
      %629 = vmatpush1.msra.mxu0 0.0
      %630 = vmatprep.subr.mxu0 0.0
      %631 = vmatpush1.msra.mxu0 0.0
      %632 = vmatprep.subr.mxu0 0.0
      %633 = vmatpush1.msra.mxu0 0.0
      %634 = vmatprep.subr.mxu0 0.0
      %635 = vmatpush1.msra.mxu0 0.0
      %636 = vmatprep.subr.mxu0 0.0
      %637 = vmatpush1.msra.mxu0 0.0
      %638 = vmatprep.subr.mxu0 0.0
      %639 = vmatpush1.msra.mxu0 0.0
      %640 = vmatprep.subr.mxu0 0.0
      %641 = vmatpush1.msra.mxu0 0.0
      %642 = vmatprep.subr.mxu0 %v610
      %643 = vmatpush1.msra.mxu0 %v608
      %644 = vmatprep.subr.mxu0 0.0
      %645 = vmatpush2.msra.mxu0 0.0
      %646 = vmatprep.subr.mxu0 0.0
      %647 = vmatpush2.msra.mxu0 0.0
      %648 = vmatprep.subr.mxu0 0.0
      %649 = vmatpush2.msra.mxu0 0.0
      %650 = vmatprep.subr.mxu0 0.0
      %651 = vmatpush2.msra.mxu0 0.0
      %652 = vmatprep.subr.mxu0 0.0
      %653 = vmatpush2.msra.mxu0 0.0
      %654 = vmatprep.subr.mxu0 0.0
      %655 = vmatpush2.msra.mxu0 0.0
      %656 = vmatprep.subr.mxu0 0.0
      %657 = vmatpush2.msra.mxu0 0.0
      %658 = vmatprep.subr.mxu0 0.0
      %659 = vmatpush2.msra.mxu0 0.0
      %660 = vmatprep.subr.mxu0 0.0
      %661 = vmatpush2.msra.mxu0 0.0
      %662 = vmatprep.subr.mxu0 0.0
      %663 = vmatpush2.msra.mxu0 0.0
      %664 = vmatprep.subr.mxu0 0.0
      %665 = vmatpush2.msra.mxu0 0.0
      %666 = vmatprep.subr.mxu0 0.0
      %667 = vmatpush2.msra.mxu0 0.0
      %668 = vmatprep.subr.mxu0 0.0
      %669 = vmatpush2.msra.mxu0 0.0
      %670 = vmatprep.subr.mxu0 0.0
      %671 = vmatpush2.msra.mxu0 0.0
      %672 = vmatprep.subr.mxu0 0.0
      %673 = vmatpush2.msra.mxu0 0.0
      %674 = vmatprep.subr.mxu0 0.0
      %675 = vmatpush2.msra.mxu0 0.0
      %676 = vmatprep.mubr.f32.mxu0 0.0
      %677 = vmatmul.mubr.f32.gmra.mxu0 %v585
      %v678 = vpop.f32.mrf.mxu0
      %v679 = vadd.f32 0.0, %v678
      %v680 = vpop.f32.mrf.mxu0
      %v681 = vadd.f32 0.0, %v680
      %682 = vmatprep.mubr.f32.mxu0 0.0
      %683 = vmatmul.mubr.f32.gmra.mxu0 %v588
      %v684 = vpop.f32.mrf.mxu0
      %v685 = vadd.f32 0.0, %v684
      %v686 = vpop.f32.mrf.mxu0
      %v687 = vadd.f32 0.0, %v686
      %688 = vmatprep.mubr.f32.mxu0 0.0
      %689 = vmatmul.mubr.f32.gmra.mxu0 %v591
      %v690 = vpop.f32.mrf.mxu0
      %v691 = vadd.f32 0.0, %v690
      %v692 = vpop.f32.mrf.mxu0
      %v693 = vadd.f32 0.0, %v692
      %694 = vmatprep.mubr.f32.mxu0 0.0
      %695 = vmatmul.mubr.f32.gmra.mxu0 %v594
      %v696 = vpop.f32.mrf.mxu0
      %v697 = vadd.f32 0.0, %v696
      %v698 = vpop.f32.mrf.mxu0
      %v699 = vadd.f32 0.0, %v698
      %700 = vmatprep.mubr.f32.mxu0 0.0
      %701 = vmatmul.mubr.f32.gmra.mxu0 %v597
      %v702 = vpop.f32.mrf.mxu0
      %v703 = vadd.f32 0.0, %v702
      %v704 = vpop.f32.mrf.mxu0
      %v705 = vadd.f32 0.0, %v704
      %706 = vmatprep.mubr.f32.mxu0 0.0
      %707 = vmatmul.mubr.f32.gmra.mxu0 %v600
      %v708 = vpop.f32.mrf.mxu0
      %v709 = vadd.f32 0.0, %v708
      %v710 = vpop.f32.mrf.mxu0
      %v711 = vadd.f32 0.0, %v710
      %712 = vmatprep.mubr.f32.mxu0 0.0
      %713 = vmatmul.mubr.f32.gmra.mxu0 %v603
      %v714 = vpop.f32.mrf.mxu0
      %v715 = vadd.f32 0.0, %v714
      %v716 = vpop.f32.mrf.mxu0
      %v717 = vadd.f32 0.0, %v716
      %718 = vmatprep.mubr.f32.mxu0 0.0
      %719 = vmatmul.mubr.f32.gmra.mxu0 %v606
      %v720 = vpop.f32.mrf.mxu0
      %v721 = vadd.f32 0.0, %v720
      %v722 = vpop.f32.mrf.mxu0
      %v723 = vadd.f32 0.0, %v722
      %724 = vdwg.mxu0
      %v725 = vadd.f32 %v523, %v679
      %v726 = vadd.f32 %v525, %v681
      %v727 = vadd.f32 %v529, %v685
      %v728 = vadd.f32 %v531, %v687
      %v729 = vadd.f32 %v535, %v691
      %v730 = vadd.f32 %v537, %v693
      %v731 = vadd.f32 %v541, %v697
      %v732 = vadd.f32 %v543, %v699
      %v733 = vadd.f32 %v547, %v703
      %v734 = vadd.f32 %v549, %v705
      %v735 = vadd.f32 %v553, %v709
      %v736 = vadd.f32 %v555, %v711
      %v737 = vadd.f32 %v559, %v715
      %v738 = vadd.f32 %v561, %v717
      %v739 = vadd.f32 %v565, %v721
      %v740 = vadd.f32 %v567, %v723
      %v741 = vld [vmem:[%s2] sm:$0xff]
      %v742 = vld [vmem:[%s2 + $0x8] sm:$0xff]
      %v743 = vld [vmem:[%s2 + $0x10] sm:$0xff]
      %v744 = vld [vmem:[%s2 + $0x18] sm:$0xff]
      %v745 = vld [vmem:[%s2 + $0x20] sm:$0xff]
      %v746 = vld [vmem:[%s2 + $0x28] sm:$0xff]
      %v747 = vld [vmem:[%s2 + $0x30] sm:$0xff]
      %v748 = vld [vmem:[%s2 + $0x38] sm:$0xff]
      %750 = vset.pattern.permute.xlu0 0
      %751 = vperm.xlu0 %750, %v741
      %v752 = vpop.permute.xlu0 %751
      %755 = vset.pattern.permute.xlu0 0
      %756 = vperm.xlu0 %755, %v742
      %v757 = vpop.permute.xlu0 %756
      %760 = vset.pattern.permute.xlu0 0
      %761 = vperm.xlu0 %760, %v743
      %v762 = vpop.permute.xlu0 %761
      %765 = vset.pattern.permute.xlu0 0
      %766 = vperm.xlu0 %765, %v744
      %v767 = vpop.permute.xlu0 %766
      %770 = vset.pattern.permute.xlu0 0
      %771 = vperm.xlu0 %770, %v745
      %v772 = vpop.permute.xlu0 %771
      %775 = vset.pattern.permute.xlu0 0
      %776 = vperm.xlu0 %775, %v746
      %v777 = vpop.permute.xlu0 %776
      %780 = vset.pattern.permute.xlu0 0
      %781 = vperm.xlu0 %780, %v747
      %v782 = vpop.permute.xlu0 %781
      %785 = vset.pattern.permute.xlu0 0
      %786 = vperm.xlu0 %785, %v748
      %v787 = vpop.permute.xlu0 %786
      %v789 = vadd.f32 %v725, %v752
      %v790 = vadd.f32 %v726, %v752
      %v791 = vadd.f32 %v727, %v757
      %v792 = vadd.f32 %v728, %v757
      %v793 = vadd.f32 %v729, %v762
      %v794 = vadd.f32 %v730, %v762
      %v795 = vadd.f32 %v731, %v767
      %v796 = vadd.f32 %v732, %v767
      %v797 = vadd.f32 %v733, %v772
      %v798 = vadd.f32 %v734, %v772
      %v799 = vadd.f32 %v735, %v777
      %v800 = vadd.f32 %v736, %v777
      %v801 = vadd.f32 %v737, %v782
      %v802 = vadd.f32 %v738, %v782
      %v803 = vadd.f32 %v739, %v787
      %v804 = vadd.f32 %v740, %v787
      %s805 = smul.u32 %s21, 128
      %s806 = ssub.s32 %s805, 1
      %v807 = vlaneseq
      %v808 = vand.u32 %v807, 127
      %v809 = vadd.s32 %v808, 128
      %v810 = vstv %s806
      %v811 = vadd.s32 %v810, %v808
      %v812 = vadd.s32 %v810, %v809
      %vm813 = vcmp.ge.s32.totalorder %v811, 0
      %vm814 = vcmp.ge.s32.totalorder %v812, 0
      %vm815 = vcmp.lt.s32.totalorder %v811, 256
      %vm816 = vcmp.lt.s32.totalorder %v812, 256
      %vm817 = vmand %vm813, %vm815
      %vm818 = vmand %vm814, %vm816
      %v819 = vsel %vm817, %v789, 0.0
      %v820 = vsel %vm818, %v790, 0.0
      %v821 = vsel %vm817, %v791, 0.0
      %v822 = vsel %vm818, %v792, 0.0
      %v823 = vsel %vm817, %v793, 0.0
      %v824 = vsel %vm818, %v794, 0.0
      %v825 = vsel %vm817, %v795, 0.0
      %v826 = vsel %vm818, %v796, 0.0
      %v827 = vsel %vm817, %v797, 0.0
      %v828 = vsel %vm818, %v798, 0.0
      %v829 = vsel %vm817, %v799, 0.0
      %v830 = vsel %vm818, %v800, 0.0
      %v831 = vsel %vm817, %v801, 0.0
      %v832 = vsel %vm818, %v802, 0.0
      %v833 = vsel %vm817, %v803, 0.0
      %v834 = vsel %vm818, %v804, 0.0
      %v835 = vld [vmem:[%s3] sm:$0x7]
      %s836 = scalar_lea.vmem %s3, 4
      %v837 = vld [vmem:[%s836] sm:$0x7]
      %854 = vrot.lane.b32.xlu0 %v819, 127
      %v855 = vpop.permute.xlu0 %854
      %856 = vrot.lane.b32.xlu0 %v820, 127
      %v857 = vpop.permute.xlu0 %856
      %858 = vrot.lane.b32.xlu0 %v821, 127
      %v859 = vpop.permute.xlu0 %858
      %860 = vrot.lane.b32.xlu0 %v822, 127
      %v861 = vpop.permute.xlu0 %860
      %862 = vrot.lane.b32.xlu0 %v823, 127
      %v863 = vpop.permute.xlu0 %862
      %864 = vrot.lane.b32.xlu0 %v824, 127
      %v865 = vpop.permute.xlu0 %864
      %866 = vrot.lane.b32.xlu0 %v825, 127
      %v867 = vpop.permute.xlu0 %866
      %868 = vrot.lane.b32.xlu0 %v826, 127
      %v869 = vpop.permute.xlu0 %868
      %870 = vrot.lane.b32.xlu0 %v827, 127
      %v871 = vpop.permute.xlu0 %870
      %872 = vrot.lane.b32.xlu0 %v828, 127
      %v873 = vpop.permute.xlu0 %872
      %874 = vrot.lane.b32.xlu0 %v829, 127
      %v875 = vpop.permute.xlu0 %874
      %876 = vrot.lane.b32.xlu0 %v830, 127
      %v877 = vpop.permute.xlu0 %876
      %878 = vrot.lane.b32.xlu0 %v831, 127
      %v879 = vpop.permute.xlu0 %878
      %880 = vrot.lane.b32.xlu0 %v832, 127
      %v881 = vpop.permute.xlu0 %880
      %882 = vrot.lane.b32.xlu0 %v833, 127
      %v883 = vpop.permute.xlu0 %882
      %884 = vrot.lane.b32.xlu0 %v834, 127
      %v885 = vpop.permute.xlu0 %884
      %v886 = vsel %vm283, %v855, %v857
      %v887 = vsel %vm283, %v859, %v861
      %v888 = vsel %vm283, %v863, %v865
      %v889 = vsel %vm283, %v867, %v869
      %v890 = vsel %vm283, %v871, %v873
      %v891 = vsel %vm283, %v875, %v877
      %v892 = vsel %vm283, %v879, %v881
      %v893 = vsel %vm283, %v883, %v885
      %vm902 = vcmask 523264
      %v904 = vsel %vm902, %v837, 0
      %906 = vmatprep.subr.mxu0 0.0
      %907 = vmatpush1.msra.mxu0 0.0
      %908 = vmatprep.subr.mxu0 0.0
      %909 = vmatpush1.msra.mxu0 0.0
      %910 = vmatprep.subr.mxu0 0.0
      %911 = vmatpush1.msra.mxu0 0.0
      %912 = vmatprep.subr.mxu0 0.0
      %913 = vmatpush1.msra.mxu0 0.0
      %914 = vmatprep.subr.mxu0 0.0
      %915 = vmatpush1.msra.mxu0 0.0
      %916 = vmatprep.subr.mxu0 0.0
      %917 = vmatpush1.msra.mxu0 0.0
      %918 = vmatprep.subr.mxu0 0.0
      %919 = vmatpush1.msra.mxu0 0.0
      %920 = vmatprep.subr.mxu0 0.0
      %921 = vmatpush1.msra.mxu0 0.0
      %922 = vmatprep.subr.mxu0 0.0
      %923 = vmatpush1.msra.mxu0 %v893
      %924 = vmatprep.subr.mxu0 0.0
      %925 = vmatpush1.msra.mxu0 %v892
      %926 = vmatprep.subr.mxu0 0.0
      %927 = vmatpush1.msra.mxu0 %v891
      %928 = vmatprep.subr.mxu0 0.0
      %929 = vmatpush1.msra.mxu0 %v890
      %930 = vmatprep.subr.mxu0 0.0
      %931 = vmatpush1.msra.mxu0 %v889
      %932 = vmatprep.subr.mxu0 0.0
      %933 = vmatpush1.msra.mxu0 %v888
      %934 = vmatprep.subr.mxu0 0.0
      %935 = vmatpush1.msra.mxu0 %v887
      %936 = vmatprep.subr.mxu0 0.0
      %937 = vmatpush1.msra.mxu0 %v886
      %938 = vmatprep.subr.mxu0 0.0
      %939 = vmatpush2.msra.mxu0 0.0
      %940 = vmatprep.subr.mxu0 0.0
      %941 = vmatpush2.msra.mxu0 0.0
      %942 = vmatprep.subr.mxu0 0.0
      %943 = vmatpush2.msra.mxu0 0.0
      %944 = vmatprep.subr.mxu0 0.0
      %945 = vmatpush2.msra.mxu0 0.0
      %946 = vmatprep.subr.mxu0 0.0
      %947 = vmatpush2.msra.mxu0 0.0
      %948 = vmatprep.subr.mxu0 0.0
      %949 = vmatpush2.msra.mxu0 0.0
      %950 = vmatprep.subr.mxu0 0.0
      %951 = vmatpush2.msra.mxu0 0.0
      %952 = vmatprep.subr.mxu0 0.0
      %953 = vmatpush2.msra.mxu0 0.0
      %954 = vmatprep.subr.mxu0 0.0
      %955 = vmatpush2.msra.mxu0 0.0
      %956 = vmatprep.subr.mxu0 0.0
      %957 = vmatpush2.msra.mxu0 0.0
      %958 = vmatprep.subr.mxu0 0.0
      %959 = vmatpush2.msra.mxu0 0.0
      %960 = vmatprep.subr.mxu0 0.0
      %961 = vmatpush2.msra.mxu0 0.0
      %962 = vmatprep.subr.mxu0 0.0
      %963 = vmatpush2.msra.mxu0 0.0
      %964 = vmatprep.subr.mxu0 0.0
      %965 = vmatpush2.msra.mxu0 0.0
      %966 = vmatprep.subr.mxu0 0.0
      %967 = vmatpush2.msra.mxu0 0.0
      %968 = vmatprep.subr.mxu0 0.0
      %969 = vmatpush2.msra.mxu0 0.0
      %970 = vmatprep.mubr.f32.mxu0 0.0
      %971 = vmatmul.mubr.f32.gmra.mxu0 %v904
      %v972 = vpop.f32.mrf.mxu0
      %v973 = vadd.f32 0.0, %v972
      %v974 = vpop.f32.mrf.mxu0
      %975 = vdwg.mxu0
      %v977 = vsel %vm902, %v835, 0
      %979 = vmatprep.subr.mxu0 0.0
      %980 = vmatpush1.msra.mxu0 0.0
      %981 = vmatprep.subr.mxu0 0.0
      %982 = vmatpush1.msra.mxu0 0.0
      %983 = vmatprep.subr.mxu0 0.0
      %984 = vmatpush1.msra.mxu0 0.0
      %985 = vmatprep.subr.mxu0 0.0
      %986 = vmatpush1.msra.mxu0 0.0
      %987 = vmatprep.subr.mxu0 0.0
      %988 = vmatpush1.msra.mxu0 0.0
      %989 = vmatprep.subr.mxu0 0.0
      %990 = vmatpush1.msra.mxu0 0.0
      %991 = vmatprep.subr.mxu0 0.0
      %992 = vmatpush1.msra.mxu0 0.0
      %993 = vmatprep.subr.mxu0 0.0
      %994 = vmatpush1.msra.mxu0 0.0
      %995 = vmatprep.subr.mxu0 0.0
      %996 = vmatpush1.msra.mxu0 %v833
      %997 = vmatprep.subr.mxu0 0.0
      %998 = vmatpush1.msra.mxu0 %v831
      %999 = vmatprep.subr.mxu0 0.0
      %1000 = vmatpush1.msra.mxu0 %v829
      %1001 = vmatprep.subr.mxu0 0.0
      %1002 = vmatpush1.msra.mxu0 %v827
      %1003 = vmatprep.subr.mxu0 0.0
      %1004 = vmatpush1.msra.mxu0 %v825
      %1005 = vmatprep.subr.mxu0 0.0
      %1006 = vmatpush1.msra.mxu0 %v823
      %1007 = vmatprep.subr.mxu0 0.0
      %1008 = vmatpush1.msra.mxu0 %v821
      %1009 = vmatprep.subr.mxu0 0.0
      %1010 = vmatpush1.msra.mxu0 %v819
      %1011 = vmatprep.subr.mxu0 0.0
      %1012 = vmatpush2.msra.mxu0 0.0
      %1013 = vmatprep.subr.mxu0 0.0
      %1014 = vmatpush2.msra.mxu0 0.0
      %1015 = vmatprep.subr.mxu0 0.0
      %1016 = vmatpush2.msra.mxu0 0.0
      %1017 = vmatprep.subr.mxu0 0.0
      %1018 = vmatpush2.msra.mxu0 0.0
      %1019 = vmatprep.subr.mxu0 0.0
      %1020 = vmatpush2.msra.mxu0 0.0
      %1021 = vmatprep.subr.mxu0 0.0
      %1022 = vmatpush2.msra.mxu0 0.0
      %1023 = vmatprep.subr.mxu0 0.0
      %1024 = vmatpush2.msra.mxu0 0.0
      %1025 = vmatprep.subr.mxu0 0.0
      %1026 = vmatpush2.msra.mxu0 0.0
      %1027 = vmatprep.subr.mxu0 0.0
      %1028 = vmatpush2.msra.mxu0 0.0
      %1029 = vmatprep.subr.mxu0 0.0
      %1030 = vmatpush2.msra.mxu0 0.0
      %1031 = vmatprep.subr.mxu0 0.0
      %1032 = vmatpush2.msra.mxu0 0.0
      %1033 = vmatprep.subr.mxu0 0.0
      %1034 = vmatpush2.msra.mxu0 0.0
      %1035 = vmatprep.subr.mxu0 0.0
      %1036 = vmatpush2.msra.mxu0 0.0
      %1037 = vmatprep.subr.mxu0 0.0
      %1038 = vmatpush2.msra.mxu0 0.0
      %1039 = vmatprep.subr.mxu0 0.0
      %1040 = vmatpush2.msra.mxu0 0.0
      %1041 = vmatprep.subr.mxu0 0.0
      %1042 = vmatpush2.msra.mxu0 0.0
      %1043 = vmatprep.mubr.f32.mxu0 0.0
      %1044 = vmatmul.mubr.f32.gmra.mxu0 %v977
      %v1045 = vpop.f32.mrf.mxu0
      %v1046 = vadd.f32 %v973, %v1045
      %v1047 = vpop.f32.mrf.mxu0
      %1048 = vdwg.mxu0
      %s1049 = scalar_lea.vmem %s3, 8
      %v1050 = vld [vmem:[%s1049] sm:$0x7]
      %1051 = vrot.lane.b32.xlu0 %v819, 126
      %v1052 = vpop.permute.xlu0 %1051
      %1053 = vrot.lane.b32.xlu0 %v820, 126
      %v1054 = vpop.permute.xlu0 %1053
      %1055 = vrot.lane.b32.xlu0 %v821, 126
      %v1056 = vpop.permute.xlu0 %1055
      %1057 = vrot.lane.b32.xlu0 %v822, 126
      %v1058 = vpop.permute.xlu0 %1057
      %1059 = vrot.lane.b32.xlu0 %v823, 126
      %v1060 = vpop.permute.xlu0 %1059
      %1061 = vrot.lane.b32.xlu0 %v824, 126
      %v1062 = vpop.permute.xlu0 %1061
      %1063 = vrot.lane.b32.xlu0 %v825, 126
      %v1064 = vpop.permute.xlu0 %1063
      %1065 = vrot.lane.b32.xlu0 %v826, 126
      %v1066 = vpop.permute.xlu0 %1065
      %1067 = vrot.lane.b32.xlu0 %v827, 126
      %v1068 = vpop.permute.xlu0 %1067
      %1069 = vrot.lane.b32.xlu0 %v828, 126
      %v1070 = vpop.permute.xlu0 %1069
      %1071 = vrot.lane.b32.xlu0 %v829, 126
      %v1072 = vpop.permute.xlu0 %1071
      %1073 = vrot.lane.b32.xlu0 %v830, 126
      %v1074 = vpop.permute.xlu0 %1073
      %1075 = vrot.lane.b32.xlu0 %v831, 126
      %v1076 = vpop.permute.xlu0 %1075
      %1077 = vrot.lane.b32.xlu0 %v832, 126
      %v1078 = vpop.permute.xlu0 %1077
      %1079 = vrot.lane.b32.xlu0 %v833, 126
      %v1080 = vpop.permute.xlu0 %1079
      %1081 = vrot.lane.b32.xlu0 %v834, 126
      %v1082 = vpop.permute.xlu0 %1081
      %v1083 = vsel %vm582, %v1052, %v1054
      %v1084 = vsel %vm582, %v1056, %v1058
      %v1085 = vsel %vm582, %v1060, %v1062
      %v1086 = vsel %vm582, %v1064, %v1066
      %v1087 = vsel %vm582, %v1068, %v1070
      %v1088 = vsel %vm582, %v1072, %v1074
      %v1089 = vsel %vm582, %v1076, %v1078
      %v1090 = vsel %vm582, %v1080, %v1082
      %v1100 = vsel %vm902, %v1050, 0
      %1102 = vmatprep.subr.mxu0 0.0
      %1103 = vmatpush1.msra.mxu0 0.0
      %1104 = vmatprep.subr.mxu0 0.0
      %1105 = vmatpush1.msra.mxu0 0.0
      %1106 = vmatprep.subr.mxu0 0.0
      %1107 = vmatpush1.msra.mxu0 0.0
      %1108 = vmatprep.subr.mxu0 0.0
      %1109 = vmatpush1.msra.mxu0 0.0
      %1110 = vmatprep.subr.mxu0 0.0
      %1111 = vmatpush1.msra.mxu0 0.0
      %1112 = vmatprep.subr.mxu0 0.0
      %1113 = vmatpush1.msra.mxu0 0.0
      %1114 = vmatprep.subr.mxu0 0.0
      %1115 = vmatpush1.msra.mxu0 0.0
      %1116 = vmatprep.subr.mxu0 0.0
      %1117 = vmatpush1.msra.mxu0 0.0
      %1118 = vmatprep.subr.mxu0 0.0
      %1119 = vmatpush1.msra.mxu0 %v1090
      %1120 = vmatprep.subr.mxu0 0.0
      %1121 = vmatpush1.msra.mxu0 %v1089
      %1122 = vmatprep.subr.mxu0 0.0
      %1123 = vmatpush1.msra.mxu0 %v1088
      %1124 = vmatprep.subr.mxu0 0.0
      %1125 = vmatpush1.msra.mxu0 %v1087
      %1126 = vmatprep.subr.mxu0 0.0
      %1127 = vmatpush1.msra.mxu0 %v1086
      %1128 = vmatprep.subr.mxu0 0.0
      %1129 = vmatpush1.msra.mxu0 %v1085
      %1130 = vmatprep.subr.mxu0 0.0
      %1131 = vmatpush1.msra.mxu0 %v1084
      %1132 = vmatprep.subr.mxu0 0.0
      %1133 = vmatpush1.msra.mxu0 %v1083
      %1134 = vmatprep.subr.mxu0 0.0
      %1135 = vmatpush2.msra.mxu0 0.0
      %1136 = vmatprep.subr.mxu0 0.0
      %1137 = vmatpush2.msra.mxu0 0.0
      %1138 = vmatprep.subr.mxu0 0.0
      %1139 = vmatpush2.msra.mxu0 0.0
      %1140 = vmatprep.subr.mxu0 0.0
      %1141 = vmatpush2.msra.mxu0 0.0
      %1142 = vmatprep.subr.mxu0 0.0
      %1143 = vmatpush2.msra.mxu0 0.0
      %1144 = vmatprep.subr.mxu0 0.0
      %1145 = vmatpush2.msra.mxu0 0.0
      %1146 = vmatprep.subr.mxu0 0.0
      %1147 = vmatpush2.msra.mxu0 0.0
      %1148 = vmatprep.subr.mxu0 0.0
      %1149 = vmatpush2.msra.mxu0 0.0
      %1150 = vmatprep.subr.mxu0 0.0
      %1151 = vmatpush2.msra.mxu0 0.0
      %1152 = vmatprep.subr.mxu0 0.0
      %1153 = vmatpush2.msra.mxu0 0.0
      %1154 = vmatprep.subr.mxu0 0.0
      %1155 = vmatpush2.msra.mxu0 0.0
      %1156 = vmatprep.subr.mxu0 0.0
      %1157 = vmatpush2.msra.mxu0 0.0
      %1158 = vmatprep.subr.mxu0 0.0
      %1159 = vmatpush2.msra.mxu0 0.0
      %1160 = vmatprep.subr.mxu0 0.0
      %1161 = vmatpush2.msra.mxu0 0.0
      %1162 = vmatprep.subr.mxu0 0.0
      %1163 = vmatpush2.msra.mxu0 0.0
      %1164 = vmatprep.subr.mxu0 0.0
      %1165 = vmatpush2.msra.mxu0 0.0
      %1166 = vmatprep.mubr.f32.mxu0 0.0
      %1167 = vmatmul.mubr.f32.gmra.mxu0 %v1100
      %v1168 = vpop.f32.mrf.mxu0
      %v1169 = vadd.f32 0.0, %v1168
      %v1170 = vpop.f32.mrf.mxu0
      %1171 = vdwg.mxu0
      %v1172 = vadd.f32 %v1046, %v1169
      %v1173 = vld [vmem:[%s4] sm:$0x7]
      %1175 = vset.pattern.permute.xlu0 0
      %1176 = vperm.xlu0 %1175, %v1173
      %v1177 = vpop.permute.xlu0 %1176
      %v1179 = vadd.f32 %v1172, %v1177
      %1180 = vst [vmem:[%s258] sm:$0x7] %v1179
      %p1181 = scmp.lt.s32.totalorder %s20, 1
      %s1182 = scalar_select %p1181, %s20, 1
      %p1183 = scmp.lt.s32.totalorder %s21, 1
      %s1184 = scalar_select %p1183, %s21, 1
      %s1185 = smul.addr %s1182, 2
      %s1186 = sadd.s32 %s1184, %s1185
      %s1187 = smul.addr %s1186, 4
      %s1188 = scalar_lea.vmem %s5, %s1187
      // Predicated region
      $region41: #{spec2dcnn_forward.1} parent=39 // pred_check
        %p1189 = pneg %p160
      $region42: #{spec2dcnn_forward.1} parent=39 // pred_check_branch
        %1191 = sbr.rel (%p1189) target = $region44
      $region43: #{spec2dcnn_forward.1} parent=39 // pred_region
        _
      $region44: #{spec2dcnn_forward.1} parent=39 // pred_fallthru
        _
    $region40: #{spec2dcnn_forward.1} parent=5 // pred_fallthru
      _
    %p1192 = scmp.le.s32.totalorder 2, %s11
    // Predicated region
    $region45: #{spec2dcnn_forward.1} parent=5 // pred_check
      %p1193 = pneg %p1192
    $region46: #{spec2dcnn_forward.1} parent=5 // pred_check_branch
      %1195 = sbr.rel (%p1193) target = $region48
    $region47: #{spec2dcnn_forward.1} parent=5 // pred_region
      %s1196 = ssub.s32 %s11, 2
      // Predicated region
      $region49: #{spec2dcnn_forward.1} parent=47 // pred_check
        %p1197 = pneg %p166
      $region50: #{spec2dcnn_forward.1} parent=47 // pred_check_branch
        %1199 = sbr.rel (%p1197) target = $region52
      $region51: #{spec2dcnn_forward.1} parent=47 // pred_region
        %p1200 = scmp.lt.s32.totalorder %s22, 1
        %s1201 = scalar_select %p1200, %s22, 1
        %p1202 = scmp.lt.s32.totalorder %s23, 1
        %s1203 = scalar_select %p1202, %s23, 1
        %s1204 = smul.addr %s1201, 2
        %s1205 = sadd.s32 %s1203, %s1204
        %s1206 = smul.addr %s1205, 4
        %s1207 = scalar_lea.vmem %s5, %s1206
      $region52: #{spec2dcnn_forward.1} parent=47 // pred_fallthru
        _
    $region48: #{spec2dcnn_forward.1} parent=5 // pred_fallthru
      _
  $region6: #{spec2dcnn_forward.1} parent=0 // loop_footer
    %s15 = sadd.s32 1, %s11
  $region7: #{spec2dcnn_forward.1} parent=0 // loop_footer_branch
    %10 = sbr.rel target = $region3
  $region8: #{spec2dcnn_forward.1} parent=0 // loop_exit
    _

</llo_original>
